<compile_context>
chip_gen: v7x
topology: tpu7x:2x2x1
jax: 0.10.0
libtpu: 0.0.40
codegen_flags: <defaults>
</compile_context>

<pallas_src>
import functools

import jax
import jax.numpy as jnp
from jax import lax
from jax.experimental import pallas as pl
from jax.experimental.pallas import tpu as pltpu


def _basic_block_kernel(xp_ref, t1_ref, t2_ref, out_ref, *, bblk, h, compute_dtype):
    # xp_ref : (bblk, H+2, W*Cin)  f32, per-batch H-zero-padded, lane-dense
    # t1_ref : (3*W*Cin,  W*Cout)  compute_dtype, per-kh Toeplitz matrices stacked on K
    # t2_ref : (3*W*Cout, W*Cout)  compute_dtype
    # out_ref: (bblk, H, W*Cout)
    f32 = jnp.float32
    hp = h + 2
    m = bblk * hp
    wc_out = out_ref.shape[-1]

    # Batch-packed slab; activations stay f32 so the residual add is exact even
    # on the bf16 MXU path.
    xp = xp_ref[...].reshape(m, xp_ref.shape[-1])                 # (M, W*Cin) f32

    # ---- conv1: ONE K = 3*W*Cin matmul over the whole slab, then ReLU ----
    lhs1 = jnp.concatenate([xp[0:m - 2], xp[1:m - 1], xp[2:m]], axis=1)
    body = jnp.dot(lhs1.astype(compute_dtype), t1_ref[...],
                   preferred_element_type=f32)                    # (M-2, W*Cout)
    body = jnp.maximum(body, 0.0)

    # Zero the 2 cross-batch garbage rows per batch element; together with the
    # zero rows appended below this reproduces conv2's per-element H padding
    # with no VMEM scratch round trip.
    row = lax.broadcasted_iota(jnp.int32, (m - 2, wc_out), 0)
    body = jnp.where(row % hp < h, body, 0.0)

    zrow = jnp.zeros((1, wc_out), f32)
    mid = jnp.concatenate([zrow, body, zrow], axis=0)             # (M, W*Cout) f32

    # ---- conv2: ONE K = 3*W*Cout matmul; identity residual added in f32 ----
    lhs2 = jnp.concatenate([mid[0:m - 2], mid[1:m - 1], mid[2:m]], axis=1)
    acc = xp[1:m - 1] + jnp.dot(lhs2.astype(compute_dtype), t2_ref[...],
                                preferred_element_type=f32)       # (M-2, W*Cout)
    out = jnp.maximum(acc, 0.0).astype(out_ref.dtype)

    # Store only the H valid rows of each packed batch element (static unroll,
    # lane-dense unmasked stores).
    for b in range(bblk):
        out_ref[b] = out[b * hp: b * hp + h]


def scaled_std_weight(weight, gain, gamma=1.0, eps=1e-5):
    """ScaledStdConv2d.get_weight(): scaled weight standardization.

    weight: (Cout, Cin, kh, kw) OIHW; gain: (Cout, 1, 1, 1).  Matches
    torch.std_mean (unbiased std, ddof=1) over dims [1, 2, 3].
    """
    mean = jnp.mean(weight, axis=(1, 2, 3), keepdims=True)
    std = jnp.std(weight, axis=(1, 2, 3), keepdims=True, ddof=1)
    fan_in = weight.shape[1] * weight.shape[2] * weight.shape[3]
    scale = gamma * fan_in ** -0.5
    return scale * (weight - mean) / (std + eps) * gain


def _toeplitz_weights(w_oihw, width, compute_dtype):
    """Per-kh banded matmul weights, stacked along K.

    Returns (3*width*Cin, width*Cout); rows [kh*width*Cin:(kh+1)*width*Cin] hold
    T_kh with T_kh[(w+kw-1)*Cin + ci, w*Cout + co] = w[co, ci, kh, kw] for valid
    (w+kw-1) in [0, width); the band structure folds in the W zero-padding.
    """
    w_hwio = jnp.transpose(w_oihw, (2, 3, 1, 0))                  # (3, 3, Cin, Cout)
    cin, cout = w_hwio.shape[2], w_hwio.shape[3]
    mats = []
    for kh in range(3):
        t = jnp.zeros((width * cin, width * cout), jnp.float32)
        for kw in range(3):
            shift = jnp.eye(width, width, k=1 - kw, dtype=jnp.float32)
            t = t + jnp.kron(shift, w_hwio[kh, kw].astype(jnp.float32))
        mats.append(t)
    return jnp.concatenate(mats, axis=0).astype(compute_dtype)    # (3*W*Cin, W*Cout)


def basic_block_lane_dense(xp, t1, t2, h, *, compute_dtype=jnp.bfloat16,
                           out_dtype=None, batch_block=None):
    """Fused BasicBlock on lane-dense activations.

    xp: (B, H+2, W*C) f32, per-batch H-zero-padded; t1/t2: stacked Toeplitz
    weights in compute_dtype.  Returns (B, H, W*C) in out_dtype.
    """
    b_total, hp, wc = xp.shape
    assert hp == h + 2
    wc_out = t1.shape[1]
    assert t1.shape[0] == 3 * wc and t2.shape == (3 * wc_out, wc_out)
    assert wc == wc_out, "identity residual path requires Cin == Cout"
    if out_dtype is None:
        out_dtype = compute_dtype
    if batch_block is None:
        batch_block = b_total if b_total <= 8 else 8
    assert b_total % batch_block == 0
    steps = b_total // batch_block
    m = batch_block * hp

    # Advisory only: actual MXU work issued (dense bands do ~W/3 x the true
    # conv FLOPs).
    itemsize = jnp.dtype(compute_dtype).itemsize
    flops = 2 * steps * 2 * (m - 2) * (3 * wc) * wc_out
    bytes_accessed = (xp.size * 4 + (t1.size + t2.size) * itemsize
                      + b_total * h * wc_out * jnp.dtype(out_dtype).itemsize)

    kernel = functools.partial(_basic_block_kernel, bblk=batch_block, h=h,
                               compute_dtype=compute_dtype)

    return pl.pallas_call(
        kernel,
        out_shape=jax.ShapeDtypeStruct((b_total, h, wc_out), out_dtype),
        grid_spec=pltpu.PrefetchScalarGridSpec(
            num_scalar_prefetch=0,
            grid=(steps,),
            in_specs=[
                pl.BlockSpec((batch_block, hp, wc), lambda g: (g, 0, 0)),
                pl.BlockSpec((3 * wc, wc_out), lambda g: (0, 0)),
                pl.BlockSpec((3 * wc_out, wc_out), lambda g: (0, 0)),
            ],
            out_specs=pl.BlockSpec((batch_block, h, wc_out), lambda g: (g, 0, 0)),
        ),
        compiler_params=pltpu.CompilerParams(
            dimension_semantics=(("parallel",) if steps > 1 else ("arbitrary",)),
            vmem_limit_bytes=32 * 1024 * 1024,
        ),
        cost_estimate=pl.CostEstimate(flops=flops, transcendentals=0,
                                      bytes_accessed=bytes_accessed),
    )(xp, t1, t2)


def basic_block_forward(x_nchw, w1, g1, w2, g2, *, compute_dtype=jnp.bfloat16,
                        out_dtype=None, batch_block=None):
    """BasicBlock.forward with stride=1, downsample=None (identity residual).

    NCHW <-> lane-dense layout plumbing lives in this convenience wrapper; a
    real pipeline should keep activations in the lane-dense (B, H, W*C) layout
    and call basic_block_lane_dense directly.
    """
    w1s = scaled_std_weight(w1, g1)            # (Cout, Cin, 3, 3)
    w2s = scaled_std_weight(w2, g2)            # (Cout, Cout, 3, 3)
    c_out, c_in = w1s.shape[0], w1s.shape[1]
    b, c, h, w = x_nchw.shape
    assert c == c_in and c_in == c_out, "identity residual requires Cin == Cout"

    t1 = _toeplitz_weights(w1s, w, compute_dtype)
    t2 = _toeplitz_weights(w2s, w, compute_dtype)

    x_ld = jnp.transpose(x_nchw, (0, 2, 3, 1)).reshape(b, h, w * c_in)
    xp = jnp.pad(x_ld, ((0, 0), (1, 1), (0, 0))).astype(jnp.float32)

    out = basic_block_lane_dense(xp, t1, t2, h, compute_dtype=compute_dtype,
                                 out_dtype=out_dtype, batch_block=batch_block)
    return jnp.transpose(out.reshape(b, h, w, c_out), (0, 3, 1, 2))   # NCHW


def _reference(x_nchw, w1, g1, w2, g2):
    """Pure-JAX f32 reference for correctness checking."""
    w1s = scaled_std_weight(w1, g1)
    w2s = scaled_std_weight(w2, g2)
    dn = lax.conv_dimension_numbers(x_nchw.shape, w1s.shape,
                                    ('NCHW', 'OIHW', 'NCHW'))
    out = lax.conv_general_dilated(x_nchw, w1s, (1, 1), ((1, 1), (1, 1)),
                                   dimension_numbers=dn)
    out = jnp.maximum(out, 0.0)
    out = lax.conv_general_dilated(out, w2s, (1, 1), ((1, 1), (1, 1)),
                                   dimension_numbers=dn)
    out = out + x_nchw
    return jnp.maximum(out, 0.0)


if __name__ == "__main__":
    key = jax.random.PRNGKey(0)
    # inplanes == planes (no downsample, stride=1); W * C = 128 -> fully lane-dense.
    B, C, H, W = 2, 8, 16, 16
    k_x, k_w1, k_w2 = jax.random.split(key, 3)

    x = jax.random.normal(k_x, (B, C, H, W), jnp.float32)
    w1 = jax.random.normal(k_w1, (C, C, 3, 3), jnp.float32) * 0.1   # conv1 weight
    w2 = jax.random.normal(k_w2, (C, C, 3, 3), jnp.float32) * 0.1   # conv2 weight
    g1 = jnp.ones((C, 1, 1, 1), jnp.float32)   # ScaledStdConv2d gain init = ones
    g2 = jnp.ones((C, 1, 1, 1), jnp.float32)

    ref = jax.block_until_ready(_reference(x, w1, g1, w2, g2))

    # Strict structural check on the f32 operand path.
    out_f32 = jax.block_until_ready(
        basic_block_forward(x, w1, g1, w2, g2, compute_dtype=jnp.float32))
    assert out_f32.shape == (B, C, H, W)
    assert jnp.allclose(out_f32, ref, atol=1e-3, rtol=1e-3), \
        float(jnp.max(jnp.abs(out_f32 - ref)))

    # Default fast path: bf16 MXU operands + bf16 output, f32 accumulate and
    # f32 residual add (relaxed tolerance for bf16 operand rounding).
    out_bf16 = jax.block_until_ready(basic_block_forward(x, w1, g1, w2, g2))
    assert out_bf16.shape == (B, C, H, W) and out_bf16.dtype == jnp.bfloat16
    err = float(jnp.max(jnp.abs(out_bf16.astype(jnp.float32) - ref)))
    assert jnp.allclose(out_bf16.astype(jnp.float32), ref,
                        atol=1e-1, rtol=5e-2), err

    print("KERNEL_OK")
</pallas_src>

<mosaic_0001>
module attributes {stable_mosaic.version = 11 : i64} {
  func.func @_basic_block_kernel(%arg0: i32, %arg1: memref<2x18x128xf32, #tpu.memory_space<vmem>>, %arg2: memref<384x128xf32, #tpu.memory_space<vmem>>, %arg3: memref<384x128xf32, #tpu.memory_space<vmem>>, %arg4: memref<2x16x128xf32, #tpu.memory_space<vmem>>) attributes {dimension_semantics = [#tpu.dimension_semantics<arbitrary>], iteration_bounds = array<i64: 1>, scalar_prefetch = 0 : i64, scratch_operands = 0 : i64, tpu.core_type = #tpu.core_type<tc>, window_params = [{transform_indices = @transform_0, window_bounds = array<i64: 2, 18, 128>}, {pipeline_mode = #tpu.pipeline_mode<synchronous>, transform_indices = @transform_1, window_bounds = array<i64: 384, 128>}, {pipeline_mode = #tpu.pipeline_mode<synchronous>, transform_indices = @transform_2, window_bounds = array<i64: 384, 128>}, {transform_indices = @transform_3, window_bounds = array<i64: 2, 16, 128>}]} {
    %c0 = arith.constant 0 : index
    %c0_0 = arith.constant 0 : index
    %c0_1 = arith.constant 0 : index
    %0 = vector.load %arg1[%c0, %c0_0, %c0_1] : memref<2x18x128xf32, #tpu.memory_space<vmem>>, vector<2x18x128xf32>
    %1 = vector.shape_cast %0 : vector<2x18x128xf32> to vector<36x128xf32>
    %2 = vector.extract_strided_slice %1 {offsets = [0, 0], sizes = [34, 128], strides = [1, 1]} : vector<36x128xf32> to vector<34x128xf32>
    %3 = vector.extract_strided_slice %1 {offsets = [1, 0], sizes = [34, 128], strides = [1, 1]} : vector<36x128xf32> to vector<34x128xf32>
    %4 = vector.extract_strided_slice %1 {offsets = [2, 0], sizes = [34, 128], strides = [1, 1]} : vector<36x128xf32> to vector<34x128xf32>
    %5 = tpu.concatenate %2, %3, %4 in 1 : vector<34x128xf32>, vector<34x128xf32>, vector<34x128xf32> -> vector<34x384xf32>
    %c0_2 = arith.constant 0 : index
    %c0_3 = arith.constant 0 : index
    %6 = vector.load %arg2[%c0_2, %c0_3] : memref<384x128xf32, #tpu.memory_space<vmem>>, vector<384x128xf32>
    %cst = arith.constant dense<0.000000e+00> : vector<34x128xf32>
    %7 = tpu.matmul %5, %6, %cst {dimension_numbers = #tpu.dot_dimension_numbers<[1], [0], [0], [1], [0, 0, 1, 1], [], []>} : vector<34x384xf32>, vector<384x128xf32>, vector<34x128xf32> -> vector<34x128xf32>
    %cst_4 = arith.constant 0.000000e+00 : f32
    %8 = vector.broadcast %cst_4 : f32 to vector<34x128xf32>
    %9 = arith.maximumf %7, %8 : vector<34x128xf32>
    %10 = tpu.iota {dimensions = array<i32: 0>} : vector<34x128xi32>
    %c18_i32 = arith.constant 18 : i32
    %c0_i32 = arith.constant 0 : i32
    %11 = arith.cmpi eq, %c18_i32, %c0_i32 : i32
    %c1_i32 = arith.constant 1 : i32
    %12 = arith.select %11, %c1_i32, %c18_i32 : i32
    %13 = vector.broadcast %12 : i32 to vector<34x128xi32>
    %14 = arith.remsi %10, %13 : vector<34x128xi32>
    %c0_i32_5 = arith.constant 0 : i32
    %15 = vector.broadcast %c0_i32_5 : i32 to vector<34x128xi32>
    %16 = arith.cmpi ne, %14, %15 : vector<34x128xi32>
    %c0_i32_6 = arith.constant 0 : i32
    %17 = vector.broadcast %c0_i32_6 : i32 to vector<34x128xi32>
    %18 = arith.cmpi slt, %14, %17 : vector<34x128xi32>
    %c0_i32_7 = arith.constant 0 : i32
    %19 = arith.cmpi slt, %12, %c0_i32_7 : i32
    %20 = vector.broadcast %19 : i1 to vector<34x128xi1>
    %21 = vector.broadcast %20 : vector<34x128xi1> to vector<34x128xi1>
    %22 = arith.xori %18, %21 : vector<34x128xi1>
    %23 = arith.andi %22, %16 : vector<34x128xi1>
    %24 = vector.broadcast %12 : i32 to vector<34x128xi32>
    %25 = arith.addi %14, %24 : vector<34x128xi32>
    %26 = arith.select %23, %25, %14 : vector<34x128xi1>, vector<34x128xi32>
    %c16_i32 = arith.constant 16 : i32
    %27 = vector.broadcast %c16_i32 : i32 to vector<34x128xi32>
    %28 = arith.cmpi slt, %26, %27 : vector<34x128xi32>
    %cst_8 = arith.constant 0.000000e+00 : f32
    %29 = vector.broadcast %cst_8 : f32 to vector<34x128xf32>
    %30 = arith.select %28, %9, %29 : vector<34x128xi1>, vector<34x128xf32>
    %cst_9 = arith.constant 0.000000e+00 : f32
    %31 = vector.broadcast %cst_9 : f32 to vector<1x128xf32>
    %32 = tpu.concatenate %31, %30, %31 in 0 : vector<1x128xf32>, vector<34x128xf32>, vector<1x128xf32> -> vector<36x128xf32>
    %33 = vector.extract_strided_slice %32 {offsets = [0, 0], sizes = [34, 128], strides = [1, 1]} : vector<36x128xf32> to vector<34x128xf32>
    %34 = vector.extract_strided_slice %32 {offsets = [1, 0], sizes = [34, 128], strides = [1, 1]} : vector<36x128xf32> to vector<34x128xf32>
    %35 = vector.extract_strided_slice %32 {offsets = [2, 0], sizes = [34, 128], strides = [1, 1]} : vector<36x128xf32> to vector<34x128xf32>
    %36 = tpu.concatenate %33, %34, %35 in 1 : vector<34x128xf32>, vector<34x128xf32>, vector<34x128xf32> -> vector<34x384xf32>
    %37 = vector.extract_strided_slice %1 {offsets = [1, 0], sizes = [34, 128], strides = [1, 1]} : vector<36x128xf32> to vector<34x128xf32>
    %c0_10 = arith.constant 0 : index
    %c0_11 = arith.constant 0 : index
    %38 = vector.load %arg3[%c0_10, %c0_11] : memref<384x128xf32, #tpu.memory_space<vmem>>, vector<384x128xf32>
    %cst_12 = arith.constant dense<0.000000e+00> : vector<34x128xf32>
    %39 = tpu.matmul %36, %38, %cst_12 {dimension_numbers = #tpu.dot_dimension_numbers<[1], [0], [0], [1], [0, 0, 1, 1], [], []>} : vector<34x384xf32>, vector<384x128xf32>, vector<34x128xf32> -> vector<34x128xf32>
    %40 = arith.addf %37, %39 : vector<34x128xf32>
    %cst_13 = arith.constant 0.000000e+00 : f32
    %41 = vector.broadcast %cst_13 : f32 to vector<34x128xf32>
    %42 = arith.maximumf %40, %41 : vector<34x128xf32>
    %43 = vector.extract_strided_slice %42 {offsets = [0, 0], sizes = [16, 128], strides = [1, 1]} : vector<34x128xf32> to vector<16x128xf32>
    %c0_14 = arith.constant 0 : index
    %c0_15 = arith.constant 0 : index
    %c0_16 = arith.constant 0 : index
    %44 = vector.load %arg4[%c0_14, %c0_15, %c0_16] : memref<2x16x128xf32, #tpu.memory_space<vmem>>, vector<1x16x128xf32>
    %45 = vector.shape_cast %44 : vector<1x16x128xf32> to vector<16x128xf32>
    %46 = vector.shape_cast %43 : vector<16x128xf32> to vector<1x16x128xf32>
    tpu.vector_store %arg4[%c0_14, %c0_15, %c0_16], %46 {strides = array<i32>} : memref<2x16x128xf32, #tpu.memory_space<vmem>>, vector<1x16x128xf32>,
    %47 = vector.extract_strided_slice %42 {offsets = [18, 0], sizes = [16, 128], strides = [1, 1]} : vector<34x128xf32> to vector<16x128xf32>
    %c1 = arith.constant 1 : index
    %c0_17 = arith.constant 0 : index
    %c0_18 = arith.constant 0 : index
    %48 = vector.load %arg4[%c1, %c0_17, %c0_18] : memref<2x16x128xf32, #tpu.memory_space<vmem>>, vector<1x16x128xf32>
    %49 = vector.shape_cast %48 : vector<1x16x128xf32> to vector<16x128xf32>
    %50 = vector.shape_cast %47 : vector<16x128xf32> to vector<1x16x128xf32>
    tpu.vector_store %arg4[%c1, %c0_17, %c0_18], %50 {strides = array<i32>} : memref<2x16x128xf32, #tpu.memory_space<vmem>>, vector<1x16x128xf32>,
    return
  }
  func.func @transform_0(%arg0: i32) -> (i32, i32, i32) {
    %c0_i32 = arith.constant 0 : i32
    %c0_i32_0 = arith.constant 0 : i32
    %c0_i32_1 = arith.constant 0 : i32
    return %arg0, %c0_i32, %c0_i32_0 : i32, i32, i32
  }
  func.func @transform_1(%arg0: i32) -> (i32, i32) {
    %c0_i32 = arith.constant 0 : i32
    %c0_i32_0 = arith.constant 0 : i32
    %c0_i32_1 = arith.constant 0 : i32
    return %c0_i32, %c0_i32_0 : i32, i32
  }
  func.func @transform_2(%arg0: i32) -> (i32, i32) {
    %c0_i32 = arith.constant 0 : i32
    %c0_i32_0 = arith.constant 0 : i32
    %c0_i32_1 = arith.constant 0 : i32
    return %c0_i32, %c0_i32_0 : i32, i32
  }
  func.func @transform_3(%arg0: i32) -> (i32, i32, i32) {
    %c0_i32 = arith.constant 0 : i32
    %c0_i32_0 = arith.constant 0 : i32
    %c0_i32_1 = arith.constant 0 : i32
    return %arg0, %c0_i32, %c0_i32_0 : i32, i32, i32
  }
}

</mosaic_0001>

<llo_original>
// kernel: tpu_custom_call.1
$region0: #{tpu_custom_call.1}
  #allocation0 [shape = 'u32[]', space=smem, size = 0x4, offset = 0x4, fixed_abs, tag = 'smem constant byte address 0x4 - core index']
  #allocation1 [shape = 'u32[144,128]{1,0:T(1,128)}', space=vmem, size = 0x12000, scoped, tag = 'internal scratch']
  %s0 = inlined_call_operand.vmem [shape: f32[2,18,128], index: 0, kind: input, shape index: {}]
  %s1 = inlined_call_operand.hbm [shape: f32[384,128], index: 1, kind: input, shape index: {}]
  %s2 = inlined_call_operand.hbm [shape: f32[384,128], index: 2, kind: input, shape index: {}]
  %s3 = inlined_call_operand.hbm [shape: f32[2,16,128], index: 3, kind: output, shape index: {}]
  %s4 = sld [smem:[#allocation0]]
  $region30: #{tpu_custom_call.1} parent=0
    _
  %s6 = ssub.s32 1, %s4
  %s7 = scalar_select 0, %s6, %s4
  $region1: #{tpu_custom_call.1} parent=0
    #allocation2 [shape = 'u8[196608]{0}', space=vmem, size = 0x30000, scoped, tag = 'input window, operand 1, single buffered']
    #allocation3 [shape = 's32[1]{0}', space=sflag, size = 0x4, scoped, tag = 'scoped memory for tpu_custom_call.1']
    #allocation4 [shape = 's32[1]{0}', space=sflag, size = 0x4, scoped, tag = 'scoped memory for tpu_custom_call.1']
    #allocation5 [shape = 'u8[196608]{0}', space=vmem, size = 0x30000, scoped, tag = 'input window, operand 2, single buffered']
    #allocation6 [shape = 's32[1]{0}', space=sflag, size = 0x4, scoped, tag = 'scoped memory for tpu_custom_call.1']
    #allocation7 [shape = 'u8[16384]{0}', space=vmem, size = 0x4000, scoped, tag = 'output window, operand 0, single buffered']
    %8 = vsyncpa [#allocation3], 0
    %9 = vsyncpa [#allocation6], 0
    %10 = vsyncpa [#allocation4], 0
    // Predicated region
    $region2: #{tpu_custom_call.1} parent=1 // pred_check
      _
    $region3: #{tpu_custom_call.1} parent=1 // pred_check_branch
      %12 = sbr.rel (0) target = $region5
    $region4: #{tpu_custom_call.1} parent=1 // pred_region
      _
    $region5: #{tpu_custom_call.1} parent=1 // pred_fallthru
      _
    // Predicated region
    $region6: #{tpu_custom_call.1} parent=1 // pred_check
      _
    $region7: #{tpu_custom_call.1} parent=1 // pred_check_branch
      %14 = sbr.rel (0) target = $region9
    $region8: #{tpu_custom_call.1} parent=1 // pred_region
      %s16 = ssub.s32 6144, 6144
      %17 = vsyncadd [#allocation3], %s16
      %s18 = sshll.u32 [#allocation2], 4
      %s19 = int_to_ptr.vmem [resolvable:$true] %s18
      %24 = dma.hbm_to_vmem [thread:$0]  %s1, 6144, %s19, [#allocation3], 128, 128, 8
    $region9: #{tpu_custom_call.1} parent=1 // pred_fallthru
      _
    // Predicated region
    $region10: #{tpu_custom_call.1} parent=1 // pred_check
      _
    $region11: #{tpu_custom_call.1} parent=1 // pred_check_branch
      %26 = sbr.rel (0) target = $region13
    $region12: #{tpu_custom_call.1} parent=1 // pred_region
      %s28 = ssub.s32 6144, 6144
      %29 = vsyncadd [#allocation6], %s28
      %s30 = sshll.u32 [#allocation5], 4
      %s31 = int_to_ptr.vmem [resolvable:$true] %s30
      %36 = dma.hbm_to_vmem [thread:$0]  %s2, 6144, %s31, [#allocation6], 128, 128, 8
    $region13: #{tpu_custom_call.1} parent=1 // pred_fallthru
      _
    // Predicated region
    $region14: #{tpu_custom_call.1} parent=1 // pred_check
      _
    $region15: #{tpu_custom_call.1} parent=1 // pred_check_branch
      %38 = sbr.rel (0) target = $region17
    $region16: #{tpu_custom_call.1} parent=1 // pred_region
      %39 = dma.done [#allocation3], 6144
    $region17: #{tpu_custom_call.1} parent=1 // pred_fallthru
      _
    // Predicated region
    $region18: #{tpu_custom_call.1} parent=1 // pred_check
      _
    $region19: #{tpu_custom_call.1} parent=1 // pred_check_branch
      %41 = sbr.rel (0) target = $region21
    $region20: #{tpu_custom_call.1} parent=1 // pred_region
      %42 = dma.done [#allocation6], 6144
    $region21: #{tpu_custom_call.1} parent=1 // pred_fallthru
      _
    %v43 = vld [vmem:[%s0] sm:$0xff]
    %v44 = vld [vmem:[%s0 + $0x8] sm:$0xff]
    %v45 = vld [vmem:[%s0 + $0x10] sm:$0x3]
    %v46 = vld [vmem:[%s0 + $0x18] sm:$0xff]
    %v47 = vld [vmem:[%s0 + $0x20] sm:$0xff]
    %v48 = vld [vmem:[%s0 + $0x28] sm:$0x3]
    %v55 = vcombine.high %v43, %v43
    %v57 = vunpack.c.l.s4 1983009808
    %v58 = vunpack.c.0.s8 %v57
    %v59 = vlaneseq
    %v60 = vshrl.u32 %v59, 7
    %v61 = vsub.s32 %v58, %v60
    %v62 = vrot.slane %v43, %v61
    %v64 = vunpack.c.l.s4 1983009808
    %v65 = vunpack.c.0.s8 %v64
    %v66 = vlaneseq
    %v67 = vshrl.u32 %v66, 7
    %v68 = vsub.s32 %v65, %v67
    %v69 = vrot.slane %v55, %v68
    %v70 = vcombine.high %v62, %v62
    %v71 = vcombine.high %v69, %v69
    %v72 = vcombine.high %v44, %v44
    %v74 = vunpack.c.l.s4 1983009808
    %v75 = vunpack.c.0.s8 %v74
    %v76 = vlaneseq
    %v77 = vshrl.u32 %v76, 7
    %v78 = vsub.s32 %v75, %v77
    %v79 = vrot.slane %v44, %v78
    %v81 = vunpack.c.l.s4 1983009808
    %v82 = vunpack.c.0.s8 %v81
    %v83 = vlaneseq
    %v84 = vshrl.u32 %v83, 7
    %v85 = vsub.s32 %v82, %v84
    %v86 = vrot.slane %v72, %v85
    %v87 = vcombine.high %v79, %v79
    %v88 = vcombine.high %v86, %v86
    %v90 = vunpack.c.l.s4 1983009808
    %v91 = vunpack.c.0.s8 %v90
    %v92 = vlaneseq
    %v93 = vshrl.u32 %v92, 7
    %v94 = vsub.s32 %v91, %v93
    %v95 = vrot.slane %v45, %v94
    %v96 = vcombine.high %v46, %v46
    %v98 = vunpack.c.l.s4 1983009808
    %v99 = vunpack.c.0.s8 %v98
    %v100 = vlaneseq
    %v101 = vshrl.u32 %v100, 7
    %v102 = vsub.s32 %v99, %v101
    %v103 = vrot.slane %v46, %v102
    %v105 = vunpack.c.l.s4 1983009808
    %v106 = vunpack.c.0.s8 %v105
    %v107 = vlaneseq
    %v108 = vshrl.u32 %v107, 7
    %v109 = vsub.s32 %v106, %v108
    %v110 = vrot.slane %v96, %v109
    %v111 = vcombine.high %v103, %v103
    %v112 = vcombine.high %v110, %v110
    %v113 = vcombine.high %v47, %v47
    %v115 = vunpack.c.l.s4 1983009808
    %v116 = vunpack.c.0.s8 %v115
    %v117 = vlaneseq
    %v118 = vshrl.u32 %v117, 7
    %v119 = vsub.s32 %v116, %v118
    %v120 = vrot.slane %v47, %v119
    %v122 = vunpack.c.l.s4 1983009808
    %v123 = vunpack.c.0.s8 %v122
    %v124 = vlaneseq
    %v125 = vshrl.u32 %v124, 7
    %v126 = vsub.s32 %v123, %v125
    %v127 = vrot.slane %v113, %v126
    %v128 = vcombine.high %v120, %v120
    %v129 = vcombine.high %v127, %v127
    %v131 = vunpack.c.l.s4 1983009808
    %v132 = vunpack.c.0.s8 %v131
    %v133 = vlaneseq
    %v134 = vshrl.u32 %v133, 7
    %v135 = vsub.s32 %v132, %v134
    %v136 = vrot.slane %v48, %v135
    %v155 = vcombine.low %v62, %v70
    %v156 = vcombine.low %v69, %v71
    %v158 = vunpack.c.l.s4 1983009808
    %v159 = vunpack.c.0.s8 %v158
    %v160 = vlaneseq
    %v161 = vshrl.u32 %v160, 7
    %v162 = vsub.s32 %v159, %v161
    %v163 = vrot.slane %v155, %v162
    %v165 = vunpack.c.l.s4 1983009808
    %v166 = vunpack.c.0.s8 %v165
    %v167 = vlaneseq
    %v168 = vshrl.u32 %v167, 7
    %v169 = vsub.s32 %v166, %v168
    %v170 = vrot.slane %v156, %v169
    %v171 = vcombine.low %v163, %v170
    %v172 = vcombine.low %v79, %v87
    %v173 = vcombine.low %v86, %v88
    %v175 = vunpack.c.l.s4 1983009808
    %v176 = vunpack.c.0.s8 %v175
    %v177 = vlaneseq
    %v178 = vshrl.u32 %v177, 7
    %v179 = vsub.s32 %v176, %v178
    %v180 = vrot.slane %v172, %v179
    %v182 = vunpack.c.l.s4 1983009808
    %v183 = vunpack.c.0.s8 %v182
    %v184 = vlaneseq
    %v185 = vshrl.u32 %v184, 7
    %v186 = vsub.s32 %v183, %v185
    %v187 = vrot.slane %v173, %v186
    %v188 = vcombine.low %v180, %v187
    %v189 = vcombine.low %v95, %v103
    %v190 = vcombine.low %v111, %v110
    %v192 = vunpack.c.l.s4 1983009808
    %v193 = vunpack.c.0.s8 %v192
    %v194 = vlaneseq
    %v195 = vshrl.u32 %v194, 7
    %v196 = vsub.s32 %v193, %v195
    %v197 = vrot.slane %v189, %v196
    %v199 = vunpack.c.l.s4 1983009808
    %v200 = vunpack.c.0.s8 %v199
    %v201 = vlaneseq
    %v202 = vshrl.u32 %v201, 7
    %v203 = vsub.s32 %v200, %v202
    %v204 = vrot.slane %v190, %v203
    %v205 = vcombine.low %v197, %v204
    %v206 = vcombine.low %v112, %v120
    %v207 = vcombine.low %v128, %v127
    %v209 = vunpack.c.l.s4 1983009808
    %v210 = vunpack.c.0.s8 %v209
    %v211 = vlaneseq
    %v212 = vshrl.u32 %v211, 7
    %v213 = vsub.s32 %v210, %v212
    %v214 = vrot.slane %v206, %v213
    %v216 = vunpack.c.l.s4 1983009808
    %v217 = vunpack.c.0.s8 %v216
    %v218 = vlaneseq
    %v219 = vshrl.u32 %v218, 7
    %v220 = vsub.s32 %v217, %v219
    %v221 = vrot.slane %v207, %v220
    %v222 = vcombine.low %v214, %v221
    %v224 = vunpack.c.l.s4 1983009808
    %v225 = vunpack.c.0.s8 %v224
    %v226 = vlaneseq
    %v227 = vshrl.u32 %v226, 7
    %v228 = vsub.s32 %v225, %v227
    %v229 = vrot.slane %v129, %v228
    %v235 = vcombine.low %v129, %v136
    %v237 = vunpack.c.l.s4 1983009808
    %v238 = vunpack.c.0.s8 %v237
    %v239 = vlaneseq
    %v240 = vshrl.u32 %v239, 7
    %v241 = vsub.s32 %v238, %v240
    %v242 = vrot.slane %v235, %v241
    %vm243 = vcmask 1046528
    %v244 = vrot.slane %v171, 1
    %v245 = vrot.slane %v188, 1
    %v246 = vsel %vm243, %v244, %v245
    %v247 = vrot.slane %v205, 1
    %v248 = vsel %vm243, %v245, %v247
    %v249 = vrot.slane %v222, 1
    %v250 = vsel %vm243, %v247, %v249
    %v251 = vrot.slane %v242, 1
    %v252 = vsel %vm243, %v249, %v251
    %v258 = vcombine.low %v70, %v69
    %v259 = vcombine.low %v71, %v79
    %v261 = vunpack.c.l.s4 1983009808
    %v262 = vunpack.c.0.s8 %v261
    %v263 = vlaneseq
    %v264 = vshrl.u32 %v263, 7
    %v265 = vsub.s32 %v262, %v264
    %v266 = vrot.slane %v258, %v265
    %v268 = vunpack.c.l.s4 1983009808
    %v269 = vunpack.c.0.s8 %v268
    %v270 = vlaneseq
    %v271 = vshrl.u32 %v270, 7
    %v272 = vsub.s32 %v269, %v271
    %v273 = vrot.slane %v259, %v272
    %v274 = vcombine.low %v266, %v273
    %v275 = vcombine.low %v87, %v86
    %v276 = vcombine.low %v88, %v95
    %v278 = vunpack.c.l.s4 1983009808
    %v279 = vunpack.c.0.s8 %v278
    %v280 = vlaneseq
    %v281 = vshrl.u32 %v280, 7
    %v282 = vsub.s32 %v279, %v281
    %v283 = vrot.slane %v275, %v282
    %v285 = vunpack.c.l.s4 1983009808
    %v286 = vunpack.c.0.s8 %v285
    %v287 = vlaneseq
    %v288 = vshrl.u32 %v287, 7
    %v289 = vsub.s32 %v286, %v288
    %v290 = vrot.slane %v276, %v289
    %v291 = vcombine.low %v283, %v290
    %v292 = vcombine.low %v103, %v111
    %v293 = vcombine.low %v110, %v112
    %v295 = vunpack.c.l.s4 1983009808
    %v296 = vunpack.c.0.s8 %v295
    %v297 = vlaneseq
    %v298 = vshrl.u32 %v297, 7
    %v299 = vsub.s32 %v296, %v298
    %v300 = vrot.slane %v292, %v299
    %v302 = vunpack.c.l.s4 1983009808
    %v303 = vunpack.c.0.s8 %v302
    %v304 = vlaneseq
    %v305 = vshrl.u32 %v304, 7
    %v306 = vsub.s32 %v303, %v305
    %v307 = vrot.slane %v293, %v306
    %v308 = vcombine.low %v300, %v307
    %v309 = vcombine.low %v120, %v128
    %v310 = vcombine.low %v127, %v129
    %v312 = vunpack.c.l.s4 1983009808
    %v313 = vunpack.c.0.s8 %v312
    %v314 = vlaneseq
    %v315 = vshrl.u32 %v314, 7
    %v316 = vsub.s32 %v313, %v315
    %v317 = vrot.slane %v309, %v316
    %v319 = vunpack.c.l.s4 1983009808
    %v320 = vunpack.c.0.s8 %v319
    %v321 = vlaneseq
    %v322 = vshrl.u32 %v321, 7
    %v323 = vsub.s32 %v320, %v322
    %v324 = vrot.slane %v310, %v323
    %v325 = vcombine.low %v317, %v324
    %v327 = vunpack.c.l.s4 1983009808
    %v328 = vunpack.c.0.s8 %v327
    %v329 = vlaneseq
    %v330 = vshrl.u32 %v329, 7
    %v331 = vsub.s32 %v328, %v330
    %v332 = vrot.slane %v136, %v331
    %v338 = vld [vmem:[#allocation2] sm:$0xff]
    %v339 = vld [vmem:[#allocation2 + $0x8] sm:$0xff]
    %v340 = vld [vmem:[#allocation2 + $0x10] sm:$0xff]
    %v341 = vld [vmem:[#allocation2 + $0x18] sm:$0xff]
    %v342 = vld [vmem:[#allocation2 + $0x20] sm:$0xff]
    %v343 = vld [vmem:[#allocation2 + $0x28] sm:$0xff]
    %v344 = vld [vmem:[#allocation2 + $0x30] sm:$0xff]
    %v345 = vld [vmem:[#allocation2 + $0x38] sm:$0xff]
    %v346 = vld [vmem:[#allocation2 + $0x40] sm:$0xff]
    %v347 = vld [vmem:[#allocation2 + $0x48] sm:$0xff]
    %v348 = vld [vmem:[#allocation2 + $0x50] sm:$0xff]
    %v349 = vld [vmem:[#allocation2 + $0x58] sm:$0xff]
    %v350 = vld [vmem:[#allocation2 + $0x60] sm:$0xff]
    %v351 = vld [vmem:[#allocation2 + $0x68] sm:$0xff]
    %v352 = vld [vmem:[#allocation2 + $0x70] sm:$0xff]
    %v353 = vld [vmem:[#allocation2 + $0x78] sm:$0xff]
    %v354 = vld [vmem:[#allocation2 + $0x80] sm:$0xff]
    %v355 = vld [vmem:[#allocation2 + $0x88] sm:$0xff]
    %v356 = vld [vmem:[#allocation2 + $0x90] sm:$0xff]
    %v357 = vld [vmem:[#allocation2 + $0x98] sm:$0xff]
    %v358 = vld [vmem:[#allocation2 + $0xa0] sm:$0xff]
    %v359 = vld [vmem:[#allocation2 + $0xa8] sm:$0xff]
    %v360 = vld [vmem:[#allocation2 + $0xb0] sm:$0xff]
    %v361 = vld [vmem:[#allocation2 + $0xb8] sm:$0xff]
    %v362 = vld [vmem:[#allocation2 + $0xc0] sm:$0xff]
    %v363 = vld [vmem:[#allocation2 + $0xc8] sm:$0xff]
    %v364 = vld [vmem:[#allocation2 + $0xd0] sm:$0xff]
    %v365 = vld [vmem:[#allocation2 + $0xd8] sm:$0xff]
    %v366 = vld [vmem:[#allocation2 + $0xe0] sm:$0xff]
    %v367 = vld [vmem:[#allocation2 + $0xe8] sm:$0xff]
    %v368 = vld [vmem:[#allocation2 + $0xf0] sm:$0xff]
    %v369 = vld [vmem:[#allocation2 + $0xf8] sm:$0xff]
    %v370 = vld [vmem:[#allocation2 + $0x100] sm:$0xff]
    %v371 = vld [vmem:[#allocation2 + $0x108] sm:$0xff]
    %v372 = vld [vmem:[#allocation2 + $0x110] sm:$0xff]
    %v373 = vld [vmem:[#allocation2 + $0x118] sm:$0xff]
    %v374 = vld [vmem:[#allocation2 + $0x120] sm:$0xff]
    %v375 = vld [vmem:[#allocation2 + $0x128] sm:$0xff]
    %v376 = vld [vmem:[#allocation2 + $0x130] sm:$0xff]
    %v377 = vld [vmem:[#allocation2 + $0x138] sm:$0xff]
    %v378 = vld [vmem:[#allocation2 + $0x140] sm:$0xff]
    %v379 = vld [vmem:[#allocation2 + $0x148] sm:$0xff]
    %v380 = vld [vmem:[#allocation2 + $0x150] sm:$0xff]
    %v381 = vld [vmem:[#allocation2 + $0x158] sm:$0xff]
    %v382 = vld [vmem:[#allocation2 + $0x160] sm:$0xff]
    %v383 = vld [vmem:[#allocation2 + $0x168] sm:$0xff]
    %v384 = vld [vmem:[#allocation2 + $0x170] sm:$0xff]
    %v385 = vld [vmem:[#allocation2 + $0x178] sm:$0xff]
    %386 = vmatprep.subr.mxu0 0.0
    %387 = vmatpush1.msra.mxu0 %v338
    %388 = vmatprep.subr.mxu0 0.0
    %389 = vmatpush1.msra.mxu0 %v339
    %390 = vmatprep.subr.mxu0 0.0
    %391 = vmatpush1.msra.mxu0 %v340
    %392 = vmatprep.subr.mxu0 0.0
    %393 = vmatpush1.msra.mxu0 %v341
    %394 = vmatprep.subr.mxu0 0.0
    %395 = vmatpush1.msra.mxu0 %v342
    %396 = vmatprep.subr.mxu0 0.0
    %397 = vmatpush1.msra.mxu0 %v343
    %398 = vmatprep.subr.mxu0 0.0
    %399 = vmatpush1.msra.mxu0 %v344
    %400 = vmatprep.subr.mxu0 0.0
    %401 = vmatpush1.msra.mxu0 %v345
    %402 = vmatprep.subr.mxu0 0.0
    %403 = vmatpush1.msra.mxu0 %v346
    %404 = vmatprep.subr.mxu0 0.0
    %405 = vmatpush1.msra.mxu0 %v347
    %406 = vmatprep.subr.mxu0 0.0
    %407 = vmatpush1.msra.mxu0 %v348
    %408 = vmatprep.subr.mxu0 0.0
    %409 = vmatpush1.msra.mxu0 %v349
    %410 = vmatprep.subr.mxu0 0.0
    %411 = vmatpush1.msra.mxu0 %v350
    %412 = vmatprep.subr.mxu0 0.0
    %413 = vmatpush1.msra.mxu0 %v351
    %414 = vmatprep.subr.mxu0 0.0
    %415 = vmatpush1.msra.mxu0 %v352
    %416 = vmatprep.subr.mxu0 0.0
    %417 = vmatpush1.msra.mxu0 %v353
    %418 = vmatprep.subr.mxu0 0.0
    %419 = vmatpush1.msra.mxu0 %v354
    %420 = vmatprep.subr.mxu0 0.0
    %421 = vmatpush1.msra.mxu0 %v355
    %422 = vmatprep.subr.mxu0 0.0
    %423 = vmatpush1.msra.mxu0 %v356
    %424 = vmatprep.subr.mxu0 0.0
    %425 = vmatpush1.msra.mxu0 %v357
    %426 = vmatprep.subr.mxu0 0.0
    %427 = vmatpush1.msra.mxu0 %v358
    %428 = vmatprep.subr.mxu0 0.0
    %429 = vmatpush1.msra.mxu0 %v359
    %430 = vmatprep.subr.mxu0 0.0
    %431 = vmatpush1.msra.mxu0 %v360
    %432 = vmatprep.subr.mxu0 0.0
    %433 = vmatpush1.msra.mxu0 %v361
    %434 = vmatprep.subr.mxu0 0.0
    %435 = vmatpush1.msra.mxu0 %v362
    %436 = vmatprep.subr.mxu0 0.0
    %437 = vmatpush1.msra.mxu0 %v363
    %438 = vmatprep.subr.mxu0 0.0
    %439 = vmatpush1.msra.mxu0 %v364
    %440 = vmatprep.subr.mxu0 0.0
    %441 = vmatpush1.msra.mxu0 %v365
    %442 = vmatprep.subr.mxu0 0.0
    %443 = vmatpush1.msra.mxu0 %v366
    %444 = vmatprep.subr.mxu0 0.0
    %445 = vmatpush1.msra.mxu0 %v367
    %446 = vmatprep.subr.mxu0 0.0
    %447 = vmatpush1.msra.mxu0 %v368
    %448 = vmatprep.subr.mxu0 0.0
    %449 = vmatpush1.msra.mxu0 %v369
    %450 = vmatprep.mubr.f32.mxu0 %v246
    %451 = vmatmul.mubr.f32.gmra.mrb[0].mxu0 %v171
    %v452 = vpop.f32.mrb[0].mxu0
    %v453 = vadd.f32 0.0, %v452
    %v454 = vpop.f32.mrb[0].mxu0
    %455 = vmatprep.mubr.f32.mxu0 %v248
    %456 = vmatmul.mubr.f32.gmra.mrb[0].mxu0 %v188
    %v457 = vpop.f32.mrb[0].mxu0
    %v458 = vadd.f32 0.0, %v457
    %v459 = vpop.f32.mrb[0].mxu0
    %460 = vmatprep.mubr.f32.mxu0 %v250
    %461 = vmatmul.mubr.f32.gmra.mrb[0].mxu0 %v205
    %v462 = vpop.f32.mrb[0].mxu0
    %v463 = vadd.f32 0.0, %v462
    %v464 = vpop.f32.mrb[0].mxu0
    %465 = vmatprep.mubr.f32.mxu0 %v252
    %466 = vmatmul.mubr.f32.gmra.mrb[0].mxu0 %v222
    %v467 = vpop.f32.mrb[0].mxu0
    %v468 = vadd.f32 0.0, %v467
    %v469 = vpop.f32.mrb[0].mxu0
    %470 = vmatprep.mubr.f32.mxu0 %v251
    %471 = vmatmul.mubr.f32.gmra.mrb[0].mxu0 %v229
    %v472 = vpop.f32.mrb[0].mxu0
    %v473 = vadd.f32 0.0, %v472
    %v474 = vpop.f32.mrb[0].mxu0
    %475 = vdwg.mxu0
    %476 = vmatprep.subr.mxu0 0.0
    %477 = vmatpush1.msra.mxu0 %v370
    %478 = vmatprep.subr.mxu0 0.0
    %479 = vmatpush1.msra.mxu0 %v371
    %480 = vmatprep.subr.mxu0 0.0
    %481 = vmatpush1.msra.mxu0 %v372
    %482 = vmatprep.subr.mxu0 0.0
    %483 = vmatpush1.msra.mxu0 %v373
    %484 = vmatprep.subr.mxu0 0.0
    %485 = vmatpush1.msra.mxu0 %v374
    %486 = vmatprep.subr.mxu0 0.0
    %487 = vmatpush1.msra.mxu0 %v375
    %488 = vmatprep.subr.mxu0 0.0
    %489 = vmatpush1.msra.mxu0 %v376
    %490 = vmatprep.subr.mxu0 0.0
    %491 = vmatpush1.msra.mxu0 %v377
    %492 = vmatprep.subr.mxu0 0.0
    %493 = vmatpush1.msra.mxu0 %v378
    %494 = vmatprep.subr.mxu0 0.0
    %495 = vmatpush1.msra.mxu0 %v379
    %496 = vmatprep.subr.mxu0 0.0
    %497 = vmatpush1.msra.mxu0 %v380
    %498 = vmatprep.subr.mxu0 0.0
    %499 = vmatpush1.msra.mxu0 %v381
    %500 = vmatprep.subr.mxu0 0.0
    %501 = vmatpush1.msra.mxu0 %v382
    %502 = vmatprep.subr.mxu0 0.0
    %503 = vmatpush1.msra.mxu0 %v383
    %504 = vmatprep.subr.mxu0 0.0
    %505 = vmatpush1.msra.mxu0 %v384
    %506 = vmatprep.subr.mxu0 0.0
    %507 = vmatpush1.msra.mxu0 %v385
    %508 = vmatprep.subr.mxu0 0.0
    %509 = vmatpush1.msra.mxu0 0.0
    %510 = vmatprep.subr.mxu0 0.0
    %511 = vmatpush1.msra.mxu0 0.0
    %512 = vmatprep.subr.mxu0 0.0
    %513 = vmatpush1.msra.mxu0 0.0
    %514 = vmatprep.subr.mxu0 0.0
    %515 = vmatpush1.msra.mxu0 0.0
    %516 = vmatprep.subr.mxu0 0.0
    %517 = vmatpush1.msra.mxu0 0.0
    %518 = vmatprep.subr.mxu0 0.0
    %519 = vmatpush1.msra.mxu0 0.0
    %520 = vmatprep.subr.mxu0 0.0
    %521 = vmatpush1.msra.mxu0 0.0
    %522 = vmatprep.subr.mxu0 0.0
    %523 = vmatpush1.msra.mxu0 0.0
    %524 = vmatprep.subr.mxu0 0.0
    %525 = vmatpush1.msra.mxu0 0.0
    %526 = vmatprep.subr.mxu0 0.0
    %527 = vmatpush1.msra.mxu0 0.0
    %528 = vmatprep.subr.mxu0 0.0
    %529 = vmatpush1.msra.mxu0 0.0
    %530 = vmatprep.subr.mxu0 0.0
    %531 = vmatpush1.msra.mxu0 0.0
    %532 = vmatprep.subr.mxu0 0.0
    %533 = vmatpush1.msra.mxu0 0.0
    %534 = vmatprep.subr.mxu0 0.0
    %535 = vmatpush1.msra.mxu0 0.0
    %536 = vmatprep.subr.mxu0 0.0
    %537 = vmatpush1.msra.mxu0 0.0
    %538 = vmatprep.subr.mxu0 0.0
    %539 = vmatpush1.msra.mxu0 0.0
    %540 = vmatprep.mubr.f32.mxu0 0.0
    %541 = vmatmul.mubr.f32.gmra.mrb[0].mxu0 %v274
    %v542 = vpop.f32.mrb[0].mxu0
    %v543 = vadd.f32 %v453, %v542
    %v544 = vpop.f32.mrb[0].mxu0
    %545 = vmatprep.mubr.f32.mxu0 0.0
    %546 = vmatmul.mubr.f32.gmra.mrb[0].mxu0 %v291
    %v547 = vpop.f32.mrb[0].mxu0
    %v548 = vadd.f32 %v458, %v547
    %v549 = vpop.f32.mrb[0].mxu0
    %550 = vmatprep.mubr.f32.mxu0 0.0
    %551 = vmatmul.mubr.f32.gmra.mrb[0].mxu0 %v308
    %v552 = vpop.f32.mrb[0].mxu0
    %v553 = vadd.f32 %v463, %v552
    %v554 = vpop.f32.mrb[0].mxu0
    %555 = vmatprep.mubr.f32.mxu0 0.0
    %556 = vmatmul.mubr.f32.gmra.mrb[0].mxu0 %v325
    %v557 = vpop.f32.mrb[0].mxu0
    %v558 = vadd.f32 %v468, %v557
    %v559 = vpop.f32.mrb[0].mxu0
    %560 = vmatprep.mubr.f32.mxu0 0.0
    %561 = vmatmul.mubr.f32.gmra.mrb[0].mxu0 %v332
    %v562 = vpop.f32.mrb[0].mxu0
    %v563 = vadd.f32 %v473, %v562
    %v564 = vpop.f32.mrb[0].mxu0
    %565 = vdwg.mxu0
    %v566 = vmax.f32 %v543, 0.0
    %v567 = vmax.f32 %v548, 0.0
    %v568 = vmax.f32 %v553, 0.0
    %v569 = vmax.f32 %v558, 0.0
    %v570 = vmax.f32 %v563, 0.0
    %v571 = vlaneseq
    %v572 = vshrl.u32 %v571, 7
    %v573 = vadd.s32 %v572, 8
    %v574 = vadd.s32 %v572, 16
    %v575 = vadd.s32 %v572, 24
    %v576 = vadd.s32 %v572, 32
    %vm577 = vcmp.lt.s32.totalorder %v572, 0
    %v578 = vsub.s32 0, %v572
    %v579 = vsel %vm577, %v578, %v572
    %v580 = vmul.u32.u64.compose %v579, 3817748708
    %v581 = vextract.low.u32 %v580
    %v582 = vextract.high.u32 %v580
    %v583 = vshrl.u32 %v582, 4
    %v584 = vmul.u32 %v583, 18
    %v585 = vsub.s32 %v579, %v584
    %v586 = vsub.s32 0, %v585
    %v587 = vsel %vm577, %v586, %v585
    %vm588 = vcmp.lt.s32.totalorder %v573, 0
    %v589 = vsub.s32 0, %v573
    %v590 = vsel %vm588, %v589, %v573
    %v591 = vmul.u32.u64.compose %v590, 3817748708
    %v592 = vextract.low.u32 %v591
    %v593 = vextract.high.u32 %v591
    %v594 = vshrl.u32 %v593, 4
    %v595 = vmul.u32 %v594, 18
    %v596 = vsub.s32 %v590, %v595
    %v597 = vsub.s32 0, %v596
    %v598 = vsel %vm588, %v597, %v596
    %vm599 = vcmp.lt.s32.totalorder %v574, 0
    %v600 = vsub.s32 0, %v574
    %v601 = vsel %vm599, %v600, %v574
    %v602 = vmul.u32.u64.compose %v601, 3817748708
    %v603 = vextract.low.u32 %v602
    %v604 = vextract.high.u32 %v602
    %v605 = vshrl.u32 %v604, 4
    %v606 = vmul.u32 %v605, 18
    %v607 = vsub.s32 %v601, %v606
    %v608 = vsub.s32 0, %v607
    %v609 = vsel %vm599, %v608, %v607
    %vm610 = vcmp.lt.s32.totalorder %v575, 0
    %v611 = vsub.s32 0, %v575
    %v612 = vsel %vm610, %v611, %v575
    %v613 = vmul.u32.u64.compose %v612, 3817748708
    %v614 = vextract.low.u32 %v613
    %v615 = vextract.high.u32 %v613
    %v616 = vshrl.u32 %v615, 4
    %v617 = vmul.u32 %v616, 18
    %v618 = vsub.s32 %v612, %v617
    %v619 = vsub.s32 0, %v618
    %v620 = vsel %vm610, %v619, %v618
    %vm621 = vcmp.lt.s32.totalorder %v576, 0
    %v622 = vsub.s32 0, %v576
    %v623 = vsel %vm621, %v622, %v576
    %v624 = vmul.u32.u64.compose %v623, 3817748708
    %v625 = vextract.low.u32 %v624
    %v626 = vextract.high.u32 %v624
    %v627 = vshrl.u32 %v626, 4
    %v628 = vmul.u32 %v627, 18
    %v629 = vsub.s32 %v623, %v628
    %v630 = vsub.s32 0, %v629
    %v631 = vsel %vm621, %v630, %v629
    %vm632 = vcmp.ne.s32.totalorder %v587, 0
    %vm633 = vcmp.ne.s32.totalorder %v598, 0
    %vm634 = vcmp.ne.s32.totalorder %v609, 0
    %vm635 = vcmp.ne.s32.totalorder %v620, 0
    %vm636 = vcmp.ne.s32.totalorder %v631, 0
    %vm637 = vcmp.lt.s32.totalorder %v587, 0
    %vm638 = vcmp.lt.s32.totalorder %v598, 0
    %vm639 = vcmp.lt.s32.totalorder %v609, 0
    %vm640 = vcmp.lt.s32.totalorder %v620, 0
    %vm641 = vcmp.lt.s32.totalorder %v631, 0
    %vm642 = vmand %vm637, %vm632
    %vm643 = vmand %vm638, %vm633
    %vm644 = vmand %vm639, %vm634
    %vm645 = vmand %vm640, %vm635
    %vm646 = vmand %vm641, %vm636
    %v647 = vadd.s32 %v587, 18
    %v648 = vadd.s32 %v598, 18
    %v649 = vadd.s32 %v609, 18
    %v650 = vadd.s32 %v620, 18
    %v651 = vadd.s32 %v631, 18
    %v652 = vsel %vm642, %v647, %v587
    %v653 = vsel %vm643, %v648, %v598
    %v654 = vsel %vm644, %v649, %v609
    %v655 = vsel %vm645, %v650, %v620
    %v656 = vsel %vm646, %v651, %v631
    %vm657 = vcmp.lt.s32.totalorder %v652, 16
    %vm658 = vcmp.lt.s32.totalorder %v653, 16
    %vm659 = vcmp.lt.s32.totalorder %v654, 16
    %vm660 = vcmp.lt.s32.totalorder %v655, 16
    %vm661 = vcmp.lt.s32.totalorder %v656, 16
    %v662 = vsel %vm657, %v566, 0.0
    %v663 = vsel %vm658, %v567, 0.0
    %v664 = vsel %vm659, %v568, 0.0
    %v665 = vsel %vm660, %v569, 0.0
    %v666 = vsel %vm661, %v570, 0.0
    %vm672 = vcmask 1040384
    %v673 = vrot.slane %v662, 7
    %v674 = vrot.slane %v663, 7
    %v675 = vsel %vm672, %v673, %v674
    %v676 = vrot.slane %v664, 7
    %v677 = vsel %vm672, %v674, %v676
    %v678 = vrot.slane %v665, 7
    %v679 = vsel %vm672, %v676, %v678
    %v680 = vrot.slane %v666, 7
    %v681 = vsel %vm672, %v678, %v680
    %v687 = vsel %vm672, 0.0, %v673
    %vm688 = vcmask 1042432
    %v689 = vsel %vm688, %v681, 0.0
    %v692 = vrot.slane %v687, 1
    %v693 = vrot.slane %v675, 1
    %v694 = vsel %vm243, %v692, %v693
    %v695 = vrot.slane %v677, 1
    %v696 = vsel %vm243, %v693, %v695
    %v697 = vrot.slane %v679, 1
    %v698 = vsel %vm243, %v695, %v697
    %v699 = vrot.slane %v689, 1
    %v700 = vsel %vm243, %v697, %v699
    %vm706 = vcmask 1045504
    %v707 = vrot.slane %v687, 2
    %v708 = vrot.slane %v675, 2
    %v709 = vsel %vm706, %v707, %v708
    %v710 = vrot.slane %v677, 2
    %v711 = vsel %vm706, %v708, %v710
    %v712 = vrot.slane %v679, 2
    %v713 = vsel %vm706, %v710, %v712
    %v714 = vrot.slane %v689, 2
    %v715 = vsel %vm706, %v712, %v714
    %v721 = vld [vmem:[#allocation5] sm:$0xff]
    %v722 = vld [vmem:[#allocation5 + $0x8] sm:$0xff]
    %v723 = vld [vmem:[#allocation5 + $0x10] sm:$0xff]
    %v724 = vld [vmem:[#allocation5 + $0x18] sm:$0xff]
    %v725 = vld [vmem:[#allocation5 + $0x20] sm:$0xff]
    %v726 = vld [vmem:[#allocation5 + $0x28] sm:$0xff]
    %v727 = vld [vmem:[#allocation5 + $0x30] sm:$0xff]
    %v728 = vld [vmem:[#allocation5 + $0x38] sm:$0xff]
    %v729 = vld [vmem:[#allocation5 + $0x40] sm:$0xff]
    %v730 = vld [vmem:[#allocation5 + $0x48] sm:$0xff]
    %v731 = vld [vmem:[#allocation5 + $0x50] sm:$0xff]
    %v732 = vld [vmem:[#allocation5 + $0x58] sm:$0xff]
    %v733 = vld [vmem:[#allocation5 + $0x60] sm:$0xff]
    %v734 = vld [vmem:[#allocation5 + $0x68] sm:$0xff]
    %v735 = vld [vmem:[#allocation5 + $0x70] sm:$0xff]
    %v736 = vld [vmem:[#allocation5 + $0x78] sm:$0xff]
    %v737 = vld [vmem:[#allocation5 + $0x80] sm:$0xff]
    %v738 = vld [vmem:[#allocation5 + $0x88] sm:$0xff]
    %v739 = vld [vmem:[#allocation5 + $0x90] sm:$0xff]
    %v740 = vld [vmem:[#allocation5 + $0x98] sm:$0xff]
    %v741 = vld [vmem:[#allocation5 + $0xa0] sm:$0xff]
    %v742 = vld [vmem:[#allocation5 + $0xa8] sm:$0xff]
    %v743 = vld [vmem:[#allocation5 + $0xb0] sm:$0xff]
    %v744 = vld [vmem:[#allocation5 + $0xb8] sm:$0xff]
    %v745 = vld [vmem:[#allocation5 + $0xc0] sm:$0xff]
    %v746 = vld [vmem:[#allocation5 + $0xc8] sm:$0xff]
    %v747 = vld [vmem:[#allocation5 + $0xd0] sm:$0xff]
    %v748 = vld [vmem:[#allocation5 + $0xd8] sm:$0xff]
    %v749 = vld [vmem:[#allocation5 + $0xe0] sm:$0xff]
    %v750 = vld [vmem:[#allocation5 + $0xe8] sm:$0xff]
    %v751 = vld [vmem:[#allocation5 + $0xf0] sm:$0xff]
    %v752 = vld [vmem:[#allocation5 + $0xf8] sm:$0xff]
    %v753 = vld [vmem:[#allocation5 + $0x100] sm:$0xff]
    %v754 = vld [vmem:[#allocation5 + $0x108] sm:$0xff]
    %v755 = vld [vmem:[#allocation5 + $0x110] sm:$0xff]
    %v756 = vld [vmem:[#allocation5 + $0x118] sm:$0xff]
    %v757 = vld [vmem:[#allocation5 + $0x120] sm:$0xff]
    %v758 = vld [vmem:[#allocation5 + $0x128] sm:$0xff]
    %v759 = vld [vmem:[#allocation5 + $0x130] sm:$0xff]
    %v760 = vld [vmem:[#allocation5 + $0x138] sm:$0xff]
    %v761 = vld [vmem:[#allocation5 + $0x140] sm:$0xff]
    %v762 = vld [vmem:[#allocation5 + $0x148] sm:$0xff]
    %v763 = vld [vmem:[#allocation5 + $0x150] sm:$0xff]
    %v764 = vld [vmem:[#allocation5 + $0x158] sm:$0xff]
    %v765 = vld [vmem:[#allocation5 + $0x160] sm:$0xff]
    %v766 = vld [vmem:[#allocation5 + $0x168] sm:$0xff]
    %v767 = vld [vmem:[#allocation5 + $0x170] sm:$0xff]
    %v768 = vld [vmem:[#allocation5 + $0x178] sm:$0xff]
    %769 = vmatprep.subr.mxu0 0.0
    %770 = vmatpush1.msra.mxu0 %v721
    %771 = vmatprep.subr.mxu0 0.0
    %772 = vmatpush1.msra.mxu0 %v722
    %773 = vmatprep.subr.mxu0 0.0
    %774 = vmatpush1.msra.mxu0 %v723
    %775 = vmatprep.subr.mxu0 0.0
    %776 = vmatpush1.msra.mxu0 %v724
    %777 = vmatprep.subr.mxu0 0.0
    %778 = vmatpush1.msra.mxu0 %v725
    %779 = vmatprep.subr.mxu0 0.0
    %780 = vmatpush1.msra.mxu0 %v726
    %781 = vmatprep.subr.mxu0 0.0
    %782 = vmatpush1.msra.mxu0 %v727
    %783 = vmatprep.subr.mxu0 0.0
    %784 = vmatpush1.msra.mxu0 %v728
    %785 = vmatprep.subr.mxu0 0.0
    %786 = vmatpush1.msra.mxu0 %v729
    %787 = vmatprep.subr.mxu0 0.0
    %788 = vmatpush1.msra.mxu0 %v730
    %789 = vmatprep.subr.mxu0 0.0
    %790 = vmatpush1.msra.mxu0 %v731
    %791 = vmatprep.subr.mxu0 0.0
    %792 = vmatpush1.msra.mxu0 %v732
    %793 = vmatprep.subr.mxu0 0.0
    %794 = vmatpush1.msra.mxu0 %v733
    %795 = vmatprep.subr.mxu0 0.0
    %796 = vmatpush1.msra.mxu0 %v734
    %797 = vmatprep.subr.mxu0 0.0
    %798 = vmatpush1.msra.mxu0 %v735
    %799 = vmatprep.subr.mxu0 0.0
    %800 = vmatpush1.msra.mxu0 %v736
    %801 = vmatprep.subr.mxu0 0.0
    %802 = vmatpush1.msra.mxu0 %v737
    %803 = vmatprep.subr.mxu0 0.0
    %804 = vmatpush1.msra.mxu0 %v738
    %805 = vmatprep.subr.mxu0 0.0
    %806 = vmatpush1.msra.mxu0 %v739
    %807 = vmatprep.subr.mxu0 0.0
    %808 = vmatpush1.msra.mxu0 %v740
    %809 = vmatprep.subr.mxu0 0.0
    %810 = vmatpush1.msra.mxu0 %v741
    %811 = vmatprep.subr.mxu0 0.0
    %812 = vmatpush1.msra.mxu0 %v742
    %813 = vmatprep.subr.mxu0 0.0
    %814 = vmatpush1.msra.mxu0 %v743
    %815 = vmatprep.subr.mxu0 0.0
    %816 = vmatpush1.msra.mxu0 %v744
    %817 = vmatprep.subr.mxu0 0.0
    %818 = vmatpush1.msra.mxu0 %v745
    %819 = vmatprep.subr.mxu0 0.0
    %820 = vmatpush1.msra.mxu0 %v746
    %821 = vmatprep.subr.mxu0 0.0
    %822 = vmatpush1.msra.mxu0 %v747
    %823 = vmatprep.subr.mxu0 0.0
    %824 = vmatpush1.msra.mxu0 %v748
    %825 = vmatprep.subr.mxu0 0.0
    %826 = vmatpush1.msra.mxu0 %v749
    %827 = vmatprep.subr.mxu0 0.0
    %828 = vmatpush1.msra.mxu0 %v750
    %829 = vmatprep.subr.mxu0 0.0
    %830 = vmatpush1.msra.mxu0 %v751
    %831 = vmatprep.subr.mxu0 0.0
    %832 = vmatpush1.msra.mxu0 %v752
    %833 = vmatprep.mubr.f32.mxu0 %v694
    %834 = vmatmul.mubr.f32.gmra.mrb[0].mxu0 %v687
    %v835 = vpop.f32.mrb[0].mxu0
    %v836 = vadd.f32 0.0, %v835
    %v837 = vpop.f32.mrb[0].mxu0
    %838 = vmatprep.mubr.f32.mxu0 %v696
    %839 = vmatmul.mubr.f32.gmra.mrb[0].mxu0 %v675
    %v840 = vpop.f32.mrb[0].mxu0
    %v841 = vadd.f32 0.0, %v840
    %v842 = vpop.f32.mrb[0].mxu0
    %843 = vmatprep.mubr.f32.mxu0 %v698
    %844 = vmatmul.mubr.f32.gmra.mrb[0].mxu0 %v677
    %v845 = vpop.f32.mrb[0].mxu0
    %v846 = vadd.f32 0.0, %v845
    %v847 = vpop.f32.mrb[0].mxu0
    %848 = vmatprep.mubr.f32.mxu0 %v700
    %849 = vmatmul.mubr.f32.gmra.mrb[0].mxu0 %v679
    %v850 = vpop.f32.mrb[0].mxu0
    %v851 = vadd.f32 0.0, %v850
    %v852 = vpop.f32.mrb[0].mxu0
    %853 = vmatprep.mubr.f32.mxu0 %v699
    %854 = vmatmul.mubr.f32.gmra.mrb[0].mxu0 %v689
    %v855 = vpop.f32.mrb[0].mxu0
    %v856 = vadd.f32 0.0, %v855
    %v857 = vpop.f32.mrb[0].mxu0
    %858 = vdwg.mxu0
    %859 = vmatprep.subr.mxu0 0.0
    %860 = vmatpush1.msra.mxu0 %v753
    %861 = vmatprep.subr.mxu0 0.0
    %862 = vmatpush1.msra.mxu0 %v754
    %863 = vmatprep.subr.mxu0 0.0
    %864 = vmatpush1.msra.mxu0 %v755
    %865 = vmatprep.subr.mxu0 0.0
    %866 = vmatpush1.msra.mxu0 %v756
    %867 = vmatprep.subr.mxu0 0.0
    %868 = vmatpush1.msra.mxu0 %v757
    %869 = vmatprep.subr.mxu0 0.0
    %870 = vmatpush1.msra.mxu0 %v758
    %871 = vmatprep.subr.mxu0 0.0
    %872 = vmatpush1.msra.mxu0 %v759
    %873 = vmatprep.subr.mxu0 0.0
    %874 = vmatpush1.msra.mxu0 %v760
    %875 = vmatprep.subr.mxu0 0.0
    %876 = vmatpush1.msra.mxu0 %v761
    %877 = vmatprep.subr.mxu0 0.0
    %878 = vmatpush1.msra.mxu0 %v762
    %879 = vmatprep.subr.mxu0 0.0
    %880 = vmatpush1.msra.mxu0 %v763
    %881 = vmatprep.subr.mxu0 0.0
    %882 = vmatpush1.msra.mxu0 %v764
    %883 = vmatprep.subr.mxu0 0.0
    %884 = vmatpush1.msra.mxu0 %v765
    %885 = vmatprep.subr.mxu0 0.0
    %886 = vmatpush1.msra.mxu0 %v766
    %887 = vmatprep.subr.mxu0 0.0
    %888 = vmatpush1.msra.mxu0 %v767
    %889 = vmatprep.subr.mxu0 0.0
    %890 = vmatpush1.msra.mxu0 %v768
    %891 = vmatprep.subr.mxu0 0.0
    %892 = vmatpush1.msra.mxu0 0.0
    %893 = vmatprep.subr.mxu0 0.0
    %894 = vmatpush1.msra.mxu0 0.0
    %895 = vmatprep.subr.mxu0 0.0
    %896 = vmatpush1.msra.mxu0 0.0
    %897 = vmatprep.subr.mxu0 0.0
    %898 = vmatpush1.msra.mxu0 0.0
    %899 = vmatprep.subr.mxu0 0.0
    %900 = vmatpush1.msra.mxu0 0.0
    %901 = vmatprep.subr.mxu0 0.0
    %902 = vmatpush1.msra.mxu0 0.0
    %903 = vmatprep.subr.mxu0 0.0
    %904 = vmatpush1.msra.mxu0 0.0
    %905 = vmatprep.subr.mxu0 0.0
    %906 = vmatpush1.msra.mxu0 0.0
    %907 = vmatprep.subr.mxu0 0.0
    %908 = vmatpush1.msra.mxu0 0.0
    %909 = vmatprep.subr.mxu0 0.0
    %910 = vmatpush1.msra.mxu0 0.0
    %911 = vmatprep.subr.mxu0 0.0
    %912 = vmatpush1.msra.mxu0 0.0
    %913 = vmatprep.subr.mxu0 0.0
    %914 = vmatpush1.msra.mxu0 0.0
    %915 = vmatprep.subr.mxu0 0.0
    %916 = vmatpush1.msra.mxu0 0.0
    %917 = vmatprep.subr.mxu0 0.0
    %918 = vmatpush1.msra.mxu0 0.0
    %919 = vmatprep.subr.mxu0 0.0
    %920 = vmatpush1.msra.mxu0 0.0
    %921 = vmatprep.subr.mxu0 0.0
    %922 = vmatpush1.msra.mxu0 0.0
    %923 = vmatprep.mubr.f32.mxu0 0.0
    %924 = vmatmul.mubr.f32.gmra.mrb[0].mxu0 %v709
    %v925 = vpop.f32.mrb[0].mxu0
    %v926 = vadd.f32 %v836, %v925
    %v927 = vpop.f32.mrb[0].mxu0
    %928 = vmatprep.mubr.f32.mxu0 0.0
    %929 = vmatmul.mubr.f32.gmra.mrb[0].mxu0 %v711
    %v930 = vpop.f32.mrb[0].mxu0
    %v931 = vadd.f32 %v841, %v930
    %v932 = vpop.f32.mrb[0].mxu0
    %933 = vmatprep.mubr.f32.mxu0 0.0
    %934 = vmatmul.mubr.f32.gmra.mrb[0].mxu0 %v713
    %v935 = vpop.f32.mrb[0].mxu0
    %v936 = vadd.f32 %v846, %v935
    %v937 = vpop.f32.mrb[0].mxu0
    %938 = vmatprep.mubr.f32.mxu0 0.0
    %939 = vmatmul.mubr.f32.gmra.mrb[0].mxu0 %v715
    %v940 = vpop.f32.mrb[0].mxu0
    %v941 = vadd.f32 %v851, %v940
    %v942 = vpop.f32.mrb[0].mxu0
    %943 = vmatprep.mubr.f32.mxu0 0.0
    %944 = vmatmul.mubr.f32.gmra.mrb[0].mxu0 %v714
    %v945 = vpop.f32.mrb[0].mxu0
    %v946 = vadd.f32 %v856, %v945
    %v947 = vpop.f32.mrb[0].mxu0
    %948 = vdwg.mxu0
    %v954 = vcombine.high %v926, %v926
    %v956 = vunpack.c.l.s4 1983009808
    %v957 = vunpack.c.0.s8 %v956
    %v958 = vlaneseq
    %v959 = vshrl.u32 %v958, 7
    %v960 = vsub.s32 %v957, %v959
    %v961 = vrot.slane %v926, %v960
    %v963 = vunpack.c.l.s4 1983009808
    %v964 = vunpack.c.0.s8 %v963
    %v965 = vlaneseq
    %v966 = vshrl.u32 %v965, 7
    %v967 = vsub.s32 %v964, %v966
    %v968 = vrot.slane %v954, %v967
    %v969 = vcombine.high %v961, %v961
    %v970 = vcombine.high %v968, %v968
    %v971 = vcombine.high %v931, %v931
    %v973 = vunpack.c.l.s4 1983009808
    %v974 = vunpack.c.0.s8 %v973
    %v975 = vlaneseq
    %v976 = vshrl.u32 %v975, 7
    %v977 = vsub.s32 %v974, %v976
    %v978 = vrot.slane %v931, %v977
    %v980 = vunpack.c.l.s4 1983009808
    %v981 = vunpack.c.0.s8 %v980
    %v982 = vlaneseq
    %v983 = vshrl.u32 %v982, 7
    %v984 = vsub.s32 %v981, %v983
    %v985 = vrot.slane %v971, %v984
    %v986 = vcombine.high %v978, %v978
    %v987 = vcombine.high %v985, %v985
    %v988 = vcombine.high %v936, %v936
    %v990 = vunpack.c.l.s4 1983009808
    %v991 = vunpack.c.0.s8 %v990
    %v992 = vlaneseq
    %v993 = vshrl.u32 %v992, 7
    %v994 = vsub.s32 %v991, %v993
    %v995 = vrot.slane %v936, %v994
    %v997 = vunpack.c.l.s4 1983009808
    %v998 = vunpack.c.0.s8 %v997
    %v999 = vlaneseq
    %v1000 = vshrl.u32 %v999, 7
    %v1001 = vsub.s32 %v998, %v1000
    %v1002 = vrot.slane %v988, %v1001
    %v1003 = vcombine.high %v995, %v995
    %v1004 = vcombine.high %v1002, %v1002
    %v1005 = vcombine.high %v941, %v941
    %v1007 = vunpack.c.l.s4 1983009808
    %v1008 = vunpack.c.0.s8 %v1007
    %v1009 = vlaneseq
    %v1010 = vshrl.u32 %v1009, 7
    %v1011 = vsub.s32 %v1008, %v1010
    %v1012 = vrot.slane %v941, %v1011
    %v1014 = vunpack.c.l.s4 1983009808
    %v1015 = vunpack.c.0.s8 %v1014
    %v1016 = vlaneseq
    %v1017 = vshrl.u32 %v1016, 7
    %v1018 = vsub.s32 %v1015, %v1017
    %v1019 = vrot.slane %v1005, %v1018
    %v1020 = vcombine.high %v1012, %v1012
    %v1021 = vcombine.high %v1019, %v1019
    %v1023 = vunpack.c.l.s4 1983009808
    %v1024 = vunpack.c.0.s8 %v1023
    %v1025 = vlaneseq
    %v1026 = vshrl.u32 %v1025, 7
    %v1027 = vsub.s32 %v1024, %v1026
    %v1028 = vrot.slane %v946, %v1027
    %vm1029 = vcmask 1042434
    %vm1030 = vmor %vm672, %vm1029
    %vm1031 = vcmask 1044484
    %vm1032 = vmor %vm1030, %vm1031
    %vm1033 = vcmask 1046534
    %vm1034 = vmor %vm1032, %vm1033
    %v1035 = vrot.slane %v961, 7
    %v1036 = vrot.slane %v1035, 2
    %v1037 = vrot.slane %v969, 7
    %v1038 = vsel %vm1034, %v1036, %v1037
    %v1039 = vrot.slane %v1037, 2
    %v1040 = vrot.slane %v968, 7
    %v1041 = vsel %vm1034, %v1039, %v1040
    %v1042 = vrot.slane %v1040, 2
    %v1043 = vrot.slane %v970, 7
    %v1044 = vsel %vm1034, %v1042, %v1043
    %v1045 = vrot.slane %v1043, 2
    %v1046 = vrot.slane %v978, 7
    %v1047 = vsel %vm1034, %v1045, %v1046
    %v1048 = vrot.slane %v1046, 2
    %v1049 = vrot.slane %v986, 7
    %v1050 = vsel %vm1034, %v1048, %v1049
    %v1051 = vrot.slane %v1049, 2
    %v1052 = vrot.slane %v985, 7
    %v1053 = vsel %vm1034, %v1051, %v1052
    %v1054 = vrot.slane %v1052, 2
    %v1055 = vrot.slane %v987, 7
    %v1056 = vsel %vm1034, %v1054, %v1055
    %v1057 = vrot.slane %v1055, 2
    %v1058 = vrot.slane %v995, 7
    %v1059 = vsel %vm1034, %v1057, %v1058
    %v1060 = vrot.slane %v1058, 2
    %v1061 = vrot.slane %v1003, 7
    %v1062 = vsel %vm1034, %v1060, %v1061
    %v1063 = vrot.slane %v1061, 2
    %v1064 = vrot.slane %v1002, 7
    %v1065 = vsel %vm1034, %v1063, %v1064
    %v1066 = vrot.slane %v1064, 2
    %v1067 = vrot.slane %v1004, 7
    %v1068 = vsel %vm1034, %v1066, %v1067
    %v1069 = vrot.slane %v1067, 2
    %v1070 = vrot.slane %v1012, 7
    %v1071 = vsel %vm1034, %v1069, %v1070
    %v1072 = vrot.slane %v1070, 2
    %v1073 = vrot.slane %v1020, 7
    %v1074 = vsel %vm1034, %v1072, %v1073
    %v1075 = vrot.slane %v1073, 2
    %v1076 = vrot.slane %v1019, 7
    %v1077 = vsel %vm1034, %v1075, %v1076
    %v1078 = vrot.slane %v1076, 2
    %v1079 = vrot.slane %v1021, 7
    %v1080 = vsel %vm1034, %v1078, %v1079
    %v1081 = vrot.slane %v1079, 2
    %v1082 = vrot.slane %v1028, 7
    %v1083 = vsel %vm1034, %v1081, %v1082
    %v1084 = vrot.slane %v1082, 2
    %v1103 = vadd.f32 %v62, %v1035
    %v1104 = vadd.f32 %v70, %v1038
    %v1105 = vadd.f32 %v69, %v1041
    %v1106 = vadd.f32 %v71, %v1044
    %v1107 = vadd.f32 %v79, %v1047
    %v1108 = vadd.f32 %v87, %v1050
    %v1109 = vadd.f32 %v86, %v1053
    %v1110 = vadd.f32 %v88, %v1056
    %v1111 = vadd.f32 %v95, %v1059
    %v1112 = vadd.f32 %v103, %v1062
    %v1113 = vadd.f32 %v111, %v1065
    %v1114 = vadd.f32 %v110, %v1068
    %v1115 = vadd.f32 %v112, %v1071
    %v1116 = vadd.f32 %v120, %v1074
    %v1117 = vadd.f32 %v128, %v1077
    %v1118 = vadd.f32 %v127, %v1080
    %v1119 = vadd.f32 %v129, %v1083
    %v1120 = vadd.f32 %v136, %v1084
    %v1121 = vmax.f32 %v1103, 0.0
    %v1122 = vmax.f32 %v1104, 0.0
    %v1123 = vmax.f32 %v1105, 0.0
    %v1124 = vmax.f32 %v1106, 0.0
    %v1125 = vmax.f32 %v1107, 0.0
    %v1126 = vmax.f32 %v1108, 0.0
    %v1127 = vmax.f32 %v1109, 0.0
    %v1128 = vmax.f32 %v1110, 0.0
    %v1129 = vmax.f32 %v1111, 0.0
    %v1130 = vmax.f32 %v1112, 0.0
    %v1131 = vmax.f32 %v1113, 0.0
    %v1132 = vmax.f32 %v1114, 0.0
    %v1133 = vmax.f32 %v1115, 0.0
    %v1134 = vmax.f32 %v1116, 0.0
    %v1135 = vmax.f32 %v1117, 0.0
    %v1136 = vmax.f32 %v1118, 0.0
    %v1137 = vmax.f32 %v1119, 0.0
    %v1138 = vmax.f32 %v1120, 0.0
    %v1148 = vcombine.low %v1121, %v1122
    %v1149 = vcombine.low %v1123, %v1124
    %v1151 = vunpack.c.l.s4 1983009808
    %v1152 = vunpack.c.0.s8 %v1151
    %v1153 = vlaneseq
    %v1154 = vshrl.u32 %v1153, 7
    %v1155 = vsub.s32 %v1152, %v1154
    %v1156 = vrot.slane %v1148, %v1155
    %v1158 = vunpack.c.l.s4 1983009808
    %v1159 = vunpack.c.0.s8 %v1158
    %v1160 = vlaneseq
    %v1161 = vshrl.u32 %v1160, 7
    %v1162 = vsub.s32 %v1159, %v1161
    %v1163 = vrot.slane %v1149, %v1162
    %v1164 = vcombine.low %v1156, %v1163
    %v1165 = vcombine.low %v1125, %v1126
    %v1166 = vcombine.low %v1127, %v1128
    %v1168 = vunpack.c.l.s4 1983009808
    %v1169 = vunpack.c.0.s8 %v1168
    %v1170 = vlaneseq
    %v1171 = vshrl.u32 %v1170, 7
    %v1172 = vsub.s32 %v1169, %v1171
    %v1173 = vrot.slane %v1165, %v1172
    %v1175 = vunpack.c.l.s4 1983009808
    %v1176 = vunpack.c.0.s8 %v1175
    %v1177 = vlaneseq
    %v1178 = vshrl.u32 %v1177, 7
    %v1179 = vsub.s32 %v1176, %v1178
    %v1180 = vrot.slane %v1166, %v1179
    %v1181 = vcombine.low %v1173, %v1180
    %v1183 = vunpack.c.l.s4 1983009808
    %v1184 = vunpack.c.0.s8 %v1183
    %v1185 = vlaneseq
    %v1186 = vshrl.u32 %v1185, 7
    %v1187 = vsub.s32 %v1184, %v1186
    %v1188 = vrot.slane %v1129, %v1187
    %1192 = vst [vmem:[#allocation7 - $0x1] sm:$0xfe] %v1164
    %1193 = vst [vmem:[#allocation7 + $0x7] sm:$0xff] %v1181
    %1194 = vst [vmem:[#allocation7 + $0xf] sm:$0x1] %v1188
    %v1204 = vcombine.low %v1130, %v1131
    %v1205 = vcombine.low %v1132, %v1133
    %v1207 = vunpack.c.l.s4 1983009808
    %v1208 = vunpack.c.0.s8 %v1207
    %v1209 = vlaneseq
    %v1210 = vshrl.u32 %v1209, 7
    %v1211 = vsub.s32 %v1208, %v1210
    %v1212 = vrot.slane %v1204, %v1211
    %v1214 = vunpack.c.l.s4 1983009808
    %v1215 = vunpack.c.0.s8 %v1214
    %v1216 = vlaneseq
    %v1217 = vshrl.u32 %v1216, 7
    %v1218 = vsub.s32 %v1215, %v1217
    %v1219 = vrot.slane %v1205, %v1218
    %v1220 = vcombine.low %v1212, %v1219
    %v1221 = vcombine.low %v1134, %v1135
    %v1222 = vcombine.low %v1136, %v1137
    %v1224 = vunpack.c.l.s4 1983009808
    %v1225 = vunpack.c.0.s8 %v1224
    %v1226 = vlaneseq
    %v1227 = vshrl.u32 %v1226, 7
    %v1228 = vsub.s32 %v1225, %v1227
    %v1229 = vrot.slane %v1221, %v1228
    %v1231 = vunpack.c.l.s4 1983009808
    %v1232 = vunpack.c.0.s8 %v1231
    %v1233 = vlaneseq
    %v1234 = vshrl.u32 %v1233, 7
    %v1235 = vsub.s32 %v1232, %v1234
    %v1236 = vrot.slane %v1222, %v1235
    %v1237 = vcombine.low %v1229, %v1236
    %v1239 = vunpack.c.l.s4 1983009808
    %v1240 = vunpack.c.0.s8 %v1239
    %v1241 = vlaneseq
    %v1242 = vshrl.u32 %v1241, 7
    %v1243 = vsub.s32 %v1240, %v1242
    %v1244 = vrot.slane %v1138, %v1243
    %s1248 = scalar_lea.vmem [#allocation7], 16
    %1249 = vst [vmem:[%s1248 - $0x1] sm:$0xfe] %v1220
    %1250 = vst [vmem:[%s1248 + $0x7] sm:$0xff] %v1237
    %1251 = vst [vmem:[%s1248 + $0xf] sm:$0x1] %v1244
    // Predicated region
    $region22: #{tpu_custom_call.1} parent=1 // pred_check
      _
    $region23: #{tpu_custom_call.1} parent=1 // pred_check_branch
      %1253 = sbr.rel (0) target = $region25
    $region24: #{tpu_custom_call.1} parent=1 // pred_region
      %s1255 = ssub.s32 512, 512
      %1256 = vsyncadd [#allocation4], %s1255
      %s1257 = sshll.u32 [#allocation7], 4
      %s1258 = int_to_ptr.vmem [resolvable:$true] %s1257
      %1263 = dma.vmem_to_hbm [thread:$0]  %s1258, 512, %s3, [#allocation4], 128, 128, 8
    $region25: #{tpu_custom_call.1} parent=1 // pred_fallthru
      _
    // Predicated region
    $region26: #{tpu_custom_call.1} parent=1 // pred_check
      _
    $region27: #{tpu_custom_call.1} parent=1 // pred_check_branch
      %1265 = sbr.rel (0) target = $region29
    $region28: #{tpu_custom_call.1} parent=1 // pred_region
      %1266 = dma.done [#allocation4], 512
    $region29: #{tpu_custom_call.1} parent=1 // pred_fallthru
      _
    %1267 = vsyncpa [#allocation3], 1
    %1268 = vsyncpa [#allocation6], 1
    %1269 = vsyncpa [#allocation4], 1

</llo_original>
